<compile_context>
chip_gen: v7x
topology: tpu7x:2x2x1
jax: 0.10.0
libtpu: 0.0.40
codegen_flags: <defaults>
</compile_context>

<pallas_src>
import functools
import math

import jax
import jax.numpy as jnp
from jax import lax
from jax.experimental import pallas as pl
from jax.experimental.pallas import tpu as pltpu

LANE = 128
SUBLANE = 8
PAD_ROWS = 32  # multiple-of-32 sublanes: safe for f32 / bf16 / int8 tiling


def _num_tensorcores():
    """Best-effort TensorCores-per-chip: 1 on v5e/v6e, 2 on megacore chips.

    Any failure falls back to 2, which is correct everywhere (the spare
    parallel range is skipped in-kernel on single-core chips)."""
    try:
        kind = jax.devices()[0].device_kind.lower()
        if ("v5e" in kind or "v5 lite" in kind or
                "v6e" in kind or "v6 lite" in kind):
            return 1
    except Exception:
        pass
    return 2


def _tversky_kernel(x_ref, t_ref, o_ref, acc_ref, *,
                    n_valid, steps, tile_rows, strip_rows):
    c = pl.program_id(0)   # core / parallel axis
    i = pl.program_id(1)   # streaming (arbitrary) axis

    # Zero the per-core vector accumulators at the start of this core's range.
    @pl.when(i == 0)
    def _():
        acc_ref[...] = jnp.zeros_like(acc_ref)

    tile_elems = tile_rows * LANE
    strip_elems = strip_rows * LANE
    n_strips = tile_rows // strip_rows
    base = (c * steps + i) * tile_elems       # global element offset of tile

    def _vsum(a):
        # (strip_rows,128) -> (strip_rows//8,8,128); summing the leading axis
        # is pure vreg-wise VPU adds, no cross-lane movement.
        return jnp.sum(a.reshape(strip_rows // SUBLANE, SUBLANE, LANE), axis=0)

    def _strip(s, masked):
        # One row strip: bounded live range -> no large VMEM temporaries.
        r0 = pl.multiple_of(s * strip_rows, strip_rows)
        th = jnp.tanh(0.5 * x_ref[pl.ds(r0, strip_rows), :].astype(jnp.float32))
        t = t_ref[pl.ds(r0, strip_rows), :].astype(jnp.float32)
        if masked:
            ridx = lax.broadcasted_iota(jnp.int32, (strip_rows, LANE), 0)
            lidx = lax.broadcasted_iota(jnp.int32, (strip_rows, LANE), 1)
            valid = (base + s * strip_elems + ridx * LANE + lidx) < n_valid
            zero = jnp.float32(0.0)
            th = jnp.where(valid, th, zero)   # mask only th and t; the product
            t = jnp.where(valid, t, zero)     # inherits the mask
        acc_ref[0] += _vsum(t * th)           # -> sum(t * tanh(x/2))
        acc_ref[1] += _vsum(th)               # -> sum(tanh(x/2))
        acc_ref[2] += _vsum(t)                # -> sum(t)

    full = base + tile_elems <= n_valid
    in_range = base < n_valid

    # Fast path: fully-valid tile, strip loop with no mask work.
    @pl.when(full)
    def _():
        @pl.loop(0, n_strips)
        def _(s):
            _strip(s, masked=False)

    # Boundary tile: mask by global element index (select, so padded / edge
    # garbage can never contaminate the sums).  Fully-out-of-range clamped
    # spare blocks are skipped entirely (neither branch runs).
    @pl.when(jnp.logical_and(in_range, jnp.logical_not(full)))
    def _():
        @pl.loop(0, n_strips)
        def _(s):
            _strip(s, masked=True)

    # Finalize: one cross-lane collapse per core over the whole kernel.
    @pl.when(i == steps - 1)
    def _():
        o_ref[0, 0] = jnp.sum(acc_ref[0])
        o_ref[0, 1] = jnp.sum(acc_ref[1])
        o_ref[0, 2] = jnp.sum(acc_ref[2])


def tversky_loss(inputs, targets, *, smooth=1e-6, alpha=0.7, beta=0.3,
                 tile_rows=4096):
    """Matches TverskyLoss.forward(inputs, targets) from the PyTorch module."""
    x = inputs.reshape(-1)
    t = targets.reshape(-1)
    n = x.shape[0]
    # TODO(synk): int32 global-index mask limits n to < 2**31 elements.

    # Pad to a multiple of 32*128 elements (copy-free reshape in the common
    # case; pad contents are masked in-kernel so they are irrelevant).
    chunk = PAD_ROWS * LANE
    pad = (-n) % chunk
    if pad:
        x = jnp.pad(x, (0, pad))
        t = jnp.pad(t, (0, pad))
    rows = (n + pad) // LANE                  # multiple of 32

    # Streaming tile: multiple of 32 sublanes, never larger than the array.
    tr = max(PAD_ROWS, min(tile_rows, rows))
    tr -= tr % PAD_ROWS
    strip = math.gcd(tr, LANE)                # 32 / 64 / 128-row strips
    num_blocks = pl.cdiv(rows, tr)

    ncores = _num_tensorcores() if num_blocks > 1 else 1
    steps = pl.cdiv(num_blocks, ncores)

    x2 = x.reshape(rows, LANE)
    t2 = t.reshape(rows, LANE)

    kernel = functools.partial(_tversky_kernel, n_valid=n, steps=steps,
                               tile_rows=tr, strip_rows=strip)

    def in_map(c, i):
        # Clamp out-of-range blocks so the DMA stays in-bounds; the kernel
        # skips their compute entirely (base >= n_valid).
        return (jnp.minimum(c * steps + i, num_blocks - 1), 0)

    itembytes = x2.dtype.itemsize + t2.dtype.itemsize
    block_bytes = tr * LANE * itembytes
    vmem_limit = int(2 * block_bytes + (8 << 20))   # 2 buffers/input + headroom

    partials = pl.pallas_call(
        kernel,
        out_shape=jax.ShapeDtypeStruct((ncores, 3), jnp.float32),
        grid_spec=pltpu.PrefetchScalarGridSpec(
            num_scalar_prefetch=0,
            grid=(ncores, steps),
            in_specs=[
                pl.BlockSpec((tr, LANE), in_map),
                pl.BlockSpec((tr, LANE), in_map),
            ],
            out_specs=pl.BlockSpec((1, 3), lambda c, i: (c, 0),
                                   memory_space=pltpu.SMEM),
            scratch_shapes=[pltpu.VMEM((3, SUBLANE, LANE), jnp.float32)],
        ),
        compiler_params=pltpu.CompilerParams(
            dimension_semantics=("parallel", "arbitrary"),
            vmem_limit_bytes=vmem_limit),
        cost_estimate=pl.CostEstimate(
            flops=6 * n, transcendentals=n,
            bytes_accessed=n * itembytes + 64),
    )(x2, t2)

    sums = jnp.sum(partials, axis=0)          # combine per-core partials
    s_tth, s_th, s_t = sums[0], sums[1], sums[2]
    # sigmoid(x) = 0.5 * (1 + tanh(x/2))
    tp = 0.5 * (s_t + s_tth)                  # sum(p * t)
    sum_p = 0.5 * (jnp.float32(n) + s_th)     # sum(p)
    fp = sum_p - tp                           # sum((1 - t) * p)
    fn = s_t - tp                             # sum(t * (1 - p))
    tversky = (tp + smooth) / (tp + alpha * fp + beta * fn + smooth)
    return 1.0 - tversky


def _tversky_ref(inputs, targets, smooth=1e-6, alpha=0.7, beta=0.3):
    p = jax.nn.sigmoid(inputs.reshape(-1).astype(jnp.float32))
    t = targets.reshape(-1).astype(jnp.float32)
    TP = jnp.sum(p * t)
    FP = jnp.sum((1.0 - t) * p)
    FN = jnp.sum(t * (1.0 - p))
    return 1.0 - (TP + smooth) / (TP + alpha * FP + beta * FN + smooth)


if __name__ == "__main__":
    key = jax.random.PRNGKey(0)
    k1, k2 = jax.random.split(key)

    # NCHW-like shapes: batch=2, channels=4, spatial=16x16
    inputs = jax.random.normal(k1, (2, 4, 16, 16), dtype=jnp.float32)   # logits
    targets = (jax.random.uniform(k2, (2, 4, 16, 16)) > 0.5).astype(jnp.float32)

    loss = tversky_loss(inputs, targets)
    loss = jax.block_until_ready(loss)

    ref = _tversky_ref(inputs, targets)
    assert jnp.allclose(loss, ref, atol=1e-5, rtol=1e-5), (loss, ref)

    print("KERNEL_OK")
</pallas_src>

<mosaic_0001>
module attributes {stable_mosaic.version = 11 : i64} {
  func.func @_tversky_kernel(%arg0: i32, %arg1: i32, %arg2: memref<32x128xf32, #tpu.memory_space<vmem>>, %arg3: memref<32x128xf32, #tpu.memory_space<vmem>>, %arg4: memref<1x3xf32, #tpu.memory_space<smem>>, %arg5: memref<3x8x128xf32, #tpu.memory_space<vmem>>) attributes {dimension_semantics = [#tpu.dimension_semantics<parallel>, #tpu.dimension_semantics<arbitrary>], iteration_bounds = array<i64: 1, 1>, scalar_prefetch = 0 : i64, scratch_operands = 1 : i64, tpu.core_type = #tpu.core_type<tc>, window_params = [{transform_indices = @transform_0, window_bounds = array<i64: 32, 128>}, {transform_indices = @transform_1, window_bounds = array<i64: 32, 128>}, {transform_indices = @transform_2, window_bounds = array<i64: 1, 3>}]} {
    %c0_i32 = arith.constant 0 : i32
    %0 = arith.cmpi eq, %arg1, %c0_i32 : i32
    %1 = arith.extui %0 : i1 to i32
    %c0_i32_0 = arith.constant 0 : i32
    %2 = arith.cmpi ne, %1, %c0_i32_0 : i32
    scf.if %2 {
      %cst = arith.constant 0.000000e+00 : f32
      %18 = vector.broadcast %cst : f32 to vector<3x8x128xf32>
      %c0 = arith.constant 0 : index
      %c0_7 = arith.constant 0 : index
      %c0_8 = arith.constant 0 : index
      %19 = vector.load %arg5[%c0, %c0_7, %c0_8] : memref<3x8x128xf32, #tpu.memory_space<vmem>>, vector<3x8x128xf32>
      tpu.vector_store %arg5[%c0, %c0_7, %c0_8], %18 {strides = array<i32>} : memref<3x8x128xf32, #tpu.memory_space<vmem>>, vector<3x8x128xf32>,
    } else {
    }
    %c1_i32 = arith.constant 1 : i32
    %3 = arith.muli %arg0, %c1_i32 : i32
    %4 = arith.addi %3, %arg1 : i32
    %c4096_i32 = arith.constant 4096 : i32
    %5 = arith.muli %4, %c4096_i32 : i32
    %c4096_i32_1 = arith.constant 4096 : i32
    %6 = arith.addi %5, %c4096_i32_1 : i32
    %c2048_i32 = arith.constant 2048 : i32
    %7 = arith.cmpi sle, %6, %c2048_i32 : i32
    %c2048_i32_2 = arith.constant 2048 : i32
    %8 = arith.cmpi slt, %5, %c2048_i32_2 : i32
    %9 = arith.extui %7 : i1 to i32
    %c0_i32_3 = arith.constant 0 : i32
    %10 = arith.cmpi ne, %9, %c0_i32_3 : i32
    scf.if %10 {
      %c0_i32_7 = arith.constant 0 : i32
      %c1_i32_8 = arith.constant 1 : i32
      %18 = arith.muli %c0_i32_7, %c1_i32_8 : i32
      %c0_i32_9 = arith.constant 0 : i32
      %19 = arith.addi %c0_i32_9, %18 : i32
      %c32_i32 = arith.constant 32 : i32
      %20 = arith.muli %19, %c32_i32 : i32
      %21 = tpu.assume_multiple %20, 32 : i32
      %22 = arith.index_cast %21 : i32 to index
      %c0 = arith.constant 0 : index
      %23 = vector.load %arg2[%22, %c0] : memref<32x128xf32, #tpu.memory_space<vmem>>, vector<32x128xf32>
      %cst = arith.constant 5.000000e-01 : f32
      %24 = vector.broadcast %cst : f32 to vector<32x128xf32>
      %25 = arith.mulf %24, %23 : vector<32x128xf32>
      %26 = math.tanh %25 : vector<32x128xf32>
      %27 = arith.index_cast %21 : i32 to index
      %c0_10 = arith.constant 0 : index
      %28 = vector.load %arg3[%27, %c0_10] : memref<32x128xf32, #tpu.memory_space<vmem>>, vector<32x128xf32>
      %c0_11 = arith.constant 0 : index
      %c0_12 = arith.constant 0 : index
      %c0_13 = arith.constant 0 : index
      %29 = vector.load %arg5[%c0_11, %c0_12, %c0_13] : memref<3x8x128xf32, #tpu.memory_space<vmem>>, vector<1x8x128xf32>
      %30 = vector.shape_cast %29 : vector<1x8x128xf32> to vector<8x128xf32>
      %31 = arith.mulf %28, %26 : vector<32x128xf32>
      %32 = vector.shape_cast %31 : vector<32x128xf32> to vector<4x8x128xf32>
      %cst_14 = arith.constant dense<0.000000e+00> : vector<8x128xf32>
      %33 = vector.multi_reduction <add>, %32, %cst_14 [0] : vector<4x8x128xf32> to vector<8x128xf32>
      %34 = arith.addf %30, %33 : vector<8x128xf32>
      %c0_15 = arith.constant 0 : index
      %c0_16 = arith.constant 0 : index
      %c0_17 = arith.constant 0 : index
      %35 = vector.load %arg5[%c0_15, %c0_16, %c0_17] : memref<3x8x128xf32, #tpu.memory_space<vmem>>, vector<1x8x128xf32>
      %36 = vector.shape_cast %35 : vector<1x8x128xf32> to vector<8x128xf32>
      %37 = vector.shape_cast %34 : vector<8x128xf32> to vector<1x8x128xf32>
      tpu.vector_store %arg5[%c0_15, %c0_16, %c0_17], %37 {strides = array<i32>} : memref<3x8x128xf32, #tpu.memory_space<vmem>>, vector<1x8x128xf32>,
      %c1 = arith.constant 1 : index
      %c0_18 = arith.constant 0 : index
      %c0_19 = arith.constant 0 : index
      %38 = vector.load %arg5[%c1, %c0_18, %c0_19] : memref<3x8x128xf32, #tpu.memory_space<vmem>>, vector<1x8x128xf32>
      %39 = vector.shape_cast %38 : vector<1x8x128xf32> to vector<8x128xf32>
      %40 = vector.shape_cast %26 : vector<32x128xf32> to vector<4x8x128xf32>
      %cst_20 = arith.constant dense<0.000000e+00> : vector<8x128xf32>
      %41 = vector.multi_reduction <add>, %40, %cst_20 [0] : vector<4x8x128xf32> to vector<8x128xf32>
      %42 = arith.addf %39, %41 : vector<8x128xf32>
      %c1_21 = arith.constant 1 : index
      %c0_22 = arith.constant 0 : index
      %c0_23 = arith.constant 0 : index
      %43 = vector.load %arg5[%c1_21, %c0_22, %c0_23] : memref<3x8x128xf32, #tpu.memory_space<vmem>>, vector<1x8x128xf32>
      %44 = vector.shape_cast %43 : vector<1x8x128xf32> to vector<8x128xf32>
      %45 = vector.shape_cast %42 : vector<8x128xf32> to vector<1x8x128xf32>
      tpu.vector_store %arg5[%c1_21, %c0_22, %c0_23], %45 {strides = array<i32>} : memref<3x8x128xf32, #tpu.memory_space<vmem>>, vector<1x8x128xf32>,
      %c2 = arith.constant 2 : index
      %c0_24 = arith.constant 0 : index
      %c0_25 = arith.constant 0 : index
      %46 = vector.load %arg5[%c2, %c0_24, %c0_25] : memref<3x8x128xf32, #tpu.memory_space<vmem>>, vector<1x8x128xf32>
      %47 = vector.shape_cast %46 : vector<1x8x128xf32> to vector<8x128xf32>
      %48 = vector.shape_cast %28 : vector<32x128xf32> to vector<4x8x128xf32>
      %cst_26 = arith.constant dense<0.000000e+00> : vector<8x128xf32>
      %49 = vector.multi_reduction <add>, %48, %cst_26 [0] : vector<4x8x128xf32> to vector<8x128xf32>
      %50 = arith.addf %47, %49 : vector<8x128xf32>
      %c2_27 = arith.constant 2 : index
      %c0_28 = arith.constant 0 : index
      %c0_29 = arith.constant 0 : index
      %51 = vector.load %arg5[%c2_27, %c0_28, %c0_29] : memref<3x8x128xf32, #tpu.memory_space<vmem>>, vector<1x8x128xf32>
      %52 = vector.shape_cast %51 : vector<1x8x128xf32> to vector<8x128xf32>
      %53 = vector.shape_cast %50 : vector<8x128xf32> to vector<1x8x128xf32>
      tpu.vector_store %arg5[%c2_27, %c0_28, %c0_29], %53 {strides = array<i32>} : memref<3x8x128xf32, #tpu.memory_space<vmem>>, vector<1x8x128xf32>,
      %c1_i32_30 = arith.constant 1 : i32
    } else {
    }
    %true = arith.constant true
    %11 = arith.xori %7, %true : i1
    %12 = arith.andi %8, %11 : i1
    %13 = arith.extui %12 : i1 to i32
    %c0_i32_4 = arith.constant 0 : i32
    %14 = arith.cmpi ne, %13, %c0_i32_4 : i32
    scf.if %14 {
      %c0_i32_7 = arith.constant 0 : i32
      %c1_i32_8 = arith.constant 1 : i32
      %18 = arith.muli %c0_i32_7, %c1_i32_8 : i32
      %c0_i32_9 = arith.constant 0 : i32
      %19 = arith.addi %c0_i32_9, %18 : i32
      %c32_i32 = arith.constant 32 : i32
      %20 = arith.muli %19, %c32_i32 : i32
      %21 = tpu.assume_multiple %20, 32 : i32
      %22 = arith.index_cast %21 : i32 to index
      %c0 = arith.constant 0 : index
      %23 = vector.load %arg2[%22, %c0] : memref<32x128xf32, #tpu.memory_space<vmem>>, vector<32x128xf32>
      %cst = arith.constant 5.000000e-01 : f32
      %24 = vector.broadcast %cst : f32 to vector<32x128xf32>
      %25 = arith.mulf %24, %23 : vector<32x128xf32>
      %26 = math.tanh %25 : vector<32x128xf32>
      %27 = arith.index_cast %21 : i32 to index
      %c0_10 = arith.constant 0 : index
      %28 = vector.load %arg3[%27, %c0_10] : memref<32x128xf32, #tpu.memory_space<vmem>>, vector<32x128xf32>
      %29 = tpu.iota {dimensions = array<i32: 0>} : vector<32x128xi32>
      %30 = tpu.iota {dimensions = array<i32: 1>} : vector<32x128xi32>
      %c4096_i32_11 = arith.constant 4096 : i32
      %31 = arith.muli %19, %c4096_i32_11 : i32
      %32 = arith.addi %5, %31 : i32
      %c128_i32 = arith.constant 128 : i32
      %33 = vector.broadcast %c128_i32 : i32 to vector<32x128xi32>
      %34 = arith.muli %29, %33 : vector<32x128xi32>
      %35 = vector.broadcast %32 : i32 to vector<32x128xi32>
      %36 = arith.addi %35, %34 : vector<32x128xi32>
      %37 = arith.addi %36, %30 : vector<32x128xi32>
      %c2048_i32_12 = arith.constant 2048 : i32
      %38 = vector.broadcast %c2048_i32_12 : i32 to vector<32x128xi32>
      %39 = arith.cmpi slt, %37, %38 : vector<32x128xi32>
      %cst_13 = arith.constant 0.000000e+00 : f32
      %40 = vector.broadcast %cst_13 : f32 to vector<32x128xf32>
      %41 = arith.select %39, %26, %40 : vector<32x128xi1>, vector<32x128xf32>
      %cst_14 = arith.constant 0.000000e+00 : f32
      %42 = vector.broadcast %cst_14 : f32 to vector<32x128xf32>
      %43 = arith.select %39, %28, %42 : vector<32x128xi1>, vector<32x128xf32>
      %c0_15 = arith.constant 0 : index
      %c0_16 = arith.constant 0 : index
      %c0_17 = arith.constant 0 : index
      %44 = vector.load %arg5[%c0_15, %c0_16, %c0_17] : memref<3x8x128xf32, #tpu.memory_space<vmem>>, vector<1x8x128xf32>
      %45 = vector.shape_cast %44 : vector<1x8x128xf32> to vector<8x128xf32>
      %46 = arith.mulf %43, %41 : vector<32x128xf32>
      %47 = vector.shape_cast %46 : vector<32x128xf32> to vector<4x8x128xf32>
      %cst_18 = arith.constant dense<0.000000e+00> : vector<8x128xf32>
      %48 = vector.multi_reduction <add>, %47, %cst_18 [0] : vector<4x8x128xf32> to vector<8x128xf32>
      %49 = arith.addf %45, %48 : vector<8x128xf32>
      %c0_19 = arith.constant 0 : index
      %c0_20 = arith.constant 0 : index
      %c0_21 = arith.constant 0 : index
      %50 = vector.load %arg5[%c0_19, %c0_20, %c0_21] : memref<3x8x128xf32, #tpu.memory_space<vmem>>, vector<1x8x128xf32>
      %51 = vector.shape_cast %50 : vector<1x8x128xf32> to vector<8x128xf32>
      %52 = vector.shape_cast %49 : vector<8x128xf32> to vector<1x8x128xf32>
      tpu.vector_store %arg5[%c0_19, %c0_20, %c0_21], %52 {strides = array<i32>} : memref<3x8x128xf32, #tpu.memory_space<vmem>>, vector<1x8x128xf32>,
      %c1 = arith.constant 1 : index
      %c0_22 = arith.constant 0 : index
      %c0_23 = arith.constant 0 : index
      %53 = vector.load %arg5[%c1, %c0_22, %c0_23] : memref<3x8x128xf32, #tpu.memory_space<vmem>>, vector<1x8x128xf32>
      %54 = vector.shape_cast %53 : vector<1x8x128xf32> to vector<8x128xf32>
      %55 = vector.shape_cast %41 : vector<32x128xf32> to vector<4x8x128xf32>
      %cst_24 = arith.constant dense<0.000000e+00> : vector<8x128xf32>
      %56 = vector.multi_reduction <add>, %55, %cst_24 [0] : vector<4x8x128xf32> to vector<8x128xf32>
      %57 = arith.addf %54, %56 : vector<8x128xf32>
      %c1_25 = arith.constant 1 : index
      %c0_26 = arith.constant 0 : index
      %c0_27 = arith.constant 0 : index
      %58 = vector.load %arg5[%c1_25, %c0_26, %c0_27] : memref<3x8x128xf32, #tpu.memory_space<vmem>>, vector<1x8x128xf32>
      %59 = vector.shape_cast %58 : vector<1x8x128xf32> to vector<8x128xf32>
      %60 = vector.shape_cast %57 : vector<8x128xf32> to vector<1x8x128xf32>
      tpu.vector_store %arg5[%c1_25, %c0_26, %c0_27], %60 {strides = array<i32>} : memref<3x8x128xf32, #tpu.memory_space<vmem>>, vector<1x8x128xf32>,
      %c2 = arith.constant 2 : index
      %c0_28 = arith.constant 0 : index
      %c0_29 = arith.constant 0 : index
      %61 = vector.load %arg5[%c2, %c0_28, %c0_29] : memref<3x8x128xf32, #tpu.memory_space<vmem>>, vector<1x8x128xf32>
      %62 = vector.shape_cast %61 : vector<1x8x128xf32> to vector<8x128xf32>
      %63 = vector.shape_cast %43 : vector<32x128xf32> to vector<4x8x128xf32>
      %cst_30 = arith.constant dense<0.000000e+00> : vector<8x128xf32>
      %64 = vector.multi_reduction <add>, %63, %cst_30 [0] : vector<4x8x128xf32> to vector<8x128xf32>
      %65 = arith.addf %62, %64 : vector<8x128xf32>
      %c2_31 = arith.constant 2 : index
      %c0_32 = arith.constant 0 : index
      %c0_33 = arith.constant 0 : index
      %66 = vector.load %arg5[%c2_31, %c0_32, %c0_33] : memref<3x8x128xf32, #tpu.memory_space<vmem>>, vector<1x8x128xf32>
      %67 = vector.shape_cast %66 : vector<1x8x128xf32> to vector<8x128xf32>
      %68 = vector.shape_cast %65 : vector<8x128xf32> to vector<1x8x128xf32>
      tpu.vector_store %arg5[%c2_31, %c0_32, %c0_33], %68 {strides = array<i32>} : memref<3x8x128xf32, #tpu.memory_space<vmem>>, vector<1x8x128xf32>,
      %c1_i32_34 = arith.constant 1 : i32
    } else {
    }
    %c0_i32_5 = arith.constant 0 : i32
    %15 = arith.cmpi eq, %arg1, %c0_i32_5 : i32
    %16 = arith.extui %15 : i1 to i32
    %c0_i32_6 = arith.constant 0 : i32
    %17 = arith.cmpi ne, %16, %c0_i32_6 : i32
    scf.if %17 {
      %c0 = arith.constant 0 : index
      %c0_7 = arith.constant 0 : index
      %c0_8 = arith.constant 0 : index
      %18 = vector.load %arg5[%c0, %c0_7, %c0_8] : memref<3x8x128xf32, #tpu.memory_space<vmem>>, vector<1x8x128xf32>
      %19 = vector.shape_cast %18 : vector<1x8x128xf32> to vector<8x128xf32>
      %20 = vector.shape_cast %19 : vector<8x128xf32> to vector<1x8x128xf32>
      %cst = arith.constant dense<0.000000e+00> : vector<1xf32>
      %21 = vector.multi_reduction <add>, %20, %cst [1, 2] : vector<1x8x128xf32> to vector<1xf32>
      %22 = vector.shape_cast %21 : vector<1xf32> to vector<1x1x1xf32>
      %23 = vector.extract %22[0, 0, 0] : f32 from vector<1x1x1xf32>
      %c0_9 = arith.constant 0 : index
      %c0_10 = arith.constant 0 : index
      %24 = memref.load %arg4[%c0_9, %c0_10] : memref<1x3xf32, #tpu.memory_space<smem>>
      memref.store %23, %arg4[%c0_9, %c0_10] : memref<1x3xf32, #tpu.memory_space<smem>>
      %c1 = arith.constant 1 : index
      %c0_11 = arith.constant 0 : index
      %c0_12 = arith.constant 0 : index
      %25 = vector.load %arg5[%c1, %c0_11, %c0_12] : memref<3x8x128xf32, #tpu.memory_space<vmem>>, vector<1x8x128xf32>
      %26 = vector.shape_cast %25 : vector<1x8x128xf32> to vector<8x128xf32>
      %27 = vector.shape_cast %26 : vector<8x128xf32> to vector<1x8x128xf32>
      %cst_13 = arith.constant dense<0.000000e+00> : vector<1xf32>
      %28 = vector.multi_reduction <add>, %27, %cst_13 [1, 2] : vector<1x8x128xf32> to vector<1xf32>
      %29 = vector.shape_cast %28 : vector<1xf32> to vector<1x1x1xf32>
      %30 = vector.extract %29[0, 0, 0] : f32 from vector<1x1x1xf32>
      %c0_14 = arith.constant 0 : index
      %c1_15 = arith.constant 1 : index
      %31 = memref.load %arg4[%c0_14, %c1_15] : memref<1x3xf32, #tpu.memory_space<smem>>
      memref.store %30, %arg4[%c0_14, %c1_15] : memref<1x3xf32, #tpu.memory_space<smem>>
      %c2 = arith.constant 2 : index
      %c0_16 = arith.constant 0 : index
      %c0_17 = arith.constant 0 : index
      %32 = vector.load %arg5[%c2, %c0_16, %c0_17] : memref<3x8x128xf32, #tpu.memory_space<vmem>>, vector<1x8x128xf32>
      %33 = vector.shape_cast %32 : vector<1x8x128xf32> to vector<8x128xf32>
      %34 = vector.shape_cast %33 : vector<8x128xf32> to vector<1x8x128xf32>
      %cst_18 = arith.constant dense<0.000000e+00> : vector<1xf32>
      %35 = vector.multi_reduction <add>, %34, %cst_18 [1, 2] : vector<1x8x128xf32> to vector<1xf32>
      %36 = vector.shape_cast %35 : vector<1xf32> to vector<1x1x1xf32>
      %37 = vector.extract %36[0, 0, 0] : f32 from vector<1x1x1xf32>
      %c0_19 = arith.constant 0 : index
      %c2_20 = arith.constant 2 : index
      %38 = memref.load %arg4[%c0_19, %c2_20] : memref<1x3xf32, #tpu.memory_space<smem>>
      memref.store %37, %arg4[%c0_19, %c2_20] : memref<1x3xf32, #tpu.memory_space<smem>>
    } else {
    }
    return
  }
  func.func @transform_0(%arg0: i32, %arg1: i32) -> (i32, i32) {
    %c1_i32 = arith.constant 1 : i32
    %0 = arith.muli %arg0, %c1_i32 : i32
    %1 = arith.addi %0, %arg1 : i32
    %c0_i32 = arith.constant 0 : i32
    %2 = arith.minsi %1, %c0_i32 : i32
    %c0_i32_0 = arith.constant 0 : i32
    %c0_i32_1 = arith.constant 0 : i32
    return %2, %c0_i32_0 : i32, i32
  }
  func.func @transform_1(%arg0: i32, %arg1: i32) -> (i32, i32) {
    %c1_i32 = arith.constant 1 : i32
    %0 = arith.muli %arg0, %c1_i32 : i32
    %1 = arith.addi %0, %arg1 : i32
    %c0_i32 = arith.constant 0 : i32
    %2 = arith.minsi %1, %c0_i32 : i32
    %c0_i32_0 = arith.constant 0 : i32
    %c0_i32_1 = arith.constant 0 : i32
    return %2, %c0_i32_0 : i32, i32
  }
  func.func @transform_2(%arg0: i32, %arg1: i32) -> (i32, i32) {
    %c0_i32 = arith.constant 0 : i32
    %c0_i32_0 = arith.constant 0 : i32
    return %arg0, %c0_i32 : i32, i32
  }
}

</mosaic_0001>

<llo_original>
// kernel: tpu_custom_call.1
$region0: #{tpu_custom_call.1}
  #allocation0 [shape = 'u32[]', space=smem, size = 0x4, offset = 0x4, fixed_abs, tag = 'smem constant byte address 0x4 - core index']
  #allocation1 [shape = 'u32[144,128]{1,0:T(1,128)}', space=vmem, size = 0x12000, scoped, tag = 'internal scratch']
  #allocation2 [shape = 'f32[3,8,128]{2,1,0:T(8,128)}', space=vmem, size = 0x3000, scoped, tag = 'scratch operand']
  %s0 = inlined_call_operand.hbm [shape: f32[32,128], index: 0, kind: input, shape index: {}]
  %s1 = inlined_call_operand.hbm [shape: f32[32,128], index: 1, kind: input, shape index: {}]
  %s2 = inlined_call_operand.hbm [shape: f32[1,3], index: 2, kind: output, shape index: {}]
  %s3 = sld [smem:[#allocation0]]
  $region42: #{tpu_custom_call.1} parent=0
    _
  %s5 = ssub.s32 1, %s3
  %s6 = scalar_select 0, %s5, %s3
  $region1: #{tpu_custom_call.1} parent=0
    #allocation3 [shape = 'u8[16384]{0}', space=vmem, size = 0x4000, scoped, tag = 'input window, operand 0, single buffered']
    #allocation4 [shape = 's32[1]{0}', space=sflag, size = 0x4, scoped, tag = 'scoped memory for tpu_custom_call.1']
    #allocation5 [shape = 's32[1]{0}', space=sflag, size = 0x4, scoped, tag = 'scoped memory for tpu_custom_call.1']
    #allocation6 [shape = 'u8[16384]{0}', space=vmem, size = 0x4000, scoped, tag = 'input window, operand 1, single buffered']
    #allocation7 [shape = 's32[1]{0}', space=sflag, size = 0x4, scoped, tag = 'scoped memory for tpu_custom_call.1']
    #allocation8 [shape = 'u8[512]{0}', space=smem, size = 0x200, scoped, tag = 'output window, operand 0, single buffered']
    %7 = vsyncpa [#allocation4], 0
    %8 = vsyncpa [#allocation7], 0
    %9 = vsyncpa [#allocation5], 0
    // Predicated region
    $region2: #{tpu_custom_call.1} parent=1 // pred_check
      _
    $region3: #{tpu_custom_call.1} parent=1 // pred_check_branch
      %11 = sbr.rel (0) target = $region5
    $region4: #{tpu_custom_call.1} parent=1 // pred_region
      %s12 = sadd.s32 0, 0
      %p13 = scmp.lt.s32.totalorder %s12, 0
      %s14 = scalar_select %p13, %s12, 0
      %s15 = smul.u32 4, %s14
      %s17 = ssub.s32 512, 512
      %18 = vsyncadd [#allocation4], %s17
      %s19 = smul.addr %s15, 128
      %s20 = scalar_lea.hbm %s0, %s19
      %s21 = sshll.u32 [#allocation3], 4
      %s22 = int_to_ptr.vmem [resolvable:$true] %s21
      %27 = dma.hbm_to_vmem [thread:$0]  %s20, 512, %s22, [#allocation4], 128, 128, 8
    $region5: #{tpu_custom_call.1} parent=1 // pred_fallthru
      _
    // Predicated region
    $region6: #{tpu_custom_call.1} parent=1 // pred_check
      _
    $region7: #{tpu_custom_call.1} parent=1 // pred_check_branch
      %29 = sbr.rel (0) target = $region9
    $region8: #{tpu_custom_call.1} parent=1 // pred_region
      %s30 = sadd.s32 0, 0
      %p31 = scmp.lt.s32.totalorder %s30, 0
      %s32 = scalar_select %p31, %s30, 0
      %s33 = smul.u32 4, %s32
      %s35 = ssub.s32 512, 512
      %36 = vsyncadd [#allocation7], %s35
      %s37 = smul.addr %s33, 128
      %s38 = scalar_lea.hbm %s1, %s37
      %s39 = sshll.u32 [#allocation6], 4
      %s40 = int_to_ptr.vmem [resolvable:$true] %s39
      %45 = dma.hbm_to_vmem [thread:$0]  %s38, 512, %s40, [#allocation7], 128, 128, 8
    $region9: #{tpu_custom_call.1} parent=1 // pred_fallthru
      _
    // Predicated region
    $region10: #{tpu_custom_call.1} parent=1 // pred_check
      _
    $region11: #{tpu_custom_call.1} parent=1 // pred_check_branch
      %47 = sbr.rel (0) target = $region13
    $region12: #{tpu_custom_call.1} parent=1 // pred_region
      %48 = dma.done [#allocation4], 512
    $region13: #{tpu_custom_call.1} parent=1 // pred_fallthru
      _
    // Predicated region
    $region14: #{tpu_custom_call.1} parent=1 // pred_check
      _
    $region15: #{tpu_custom_call.1} parent=1 // pred_check_branch
      %50 = sbr.rel (0) target = $region17
    $region16: #{tpu_custom_call.1} parent=1 // pred_region
      %51 = dma.done [#allocation7], 512
    $region17: #{tpu_custom_call.1} parent=1 // pred_fallthru
      _
    %s52 = sadd.s32 0, 0
    %p53 = scmp.lt.s32.totalorder %s52, 0
    %s54 = scalar_select %p53, %s52, 0
    %s55 = smul.u32 4, %s54
    %s56 = sadd.s32 0, 0
    %p57 = scmp.lt.s32.totalorder %s56, 0
    %s58 = scalar_select %p57, %s56, 0
    %s59 = smul.u32 4, %s58
    %p60 = scmp.eq.s32.totalorder 0, 0
    // Predicated region
    $region18: #{tpu_custom_call.1} parent=1 // pred_check
      %p61 = pneg %p60
    $region19: #{tpu_custom_call.1} parent=1 // pred_check_branch
      %63 = sbr.rel (%p61) target = $region21
    $region20: #{tpu_custom_call.1} parent=1 // pred_region
      %64 = vst [vmem:[#allocation2] sm:$0xff] 0.0
      %65 = vst [vmem:[#allocation2 + $0x8] sm:$0xff] 0.0
      %66 = vst [vmem:[#allocation2 + $0x10] sm:$0xff] 0.0
    $region21: #{tpu_custom_call.1} parent=1 // pred_fallthru
      _
    %s67 = sadd.s32 0, 0
    %s68 = smul.u32 %s67, 4096
    %s69 = sadd.s32 %s68, 4096
    %p70 = scmp.le.s32.totalorder %s69, 2048
    %p71 = scmp.lt.s32.totalorder %s68, 2048
    // Predicated region
    $region22: #{tpu_custom_call.1} parent=1 // pred_check
      %p72 = pneg %p70
    $region23: #{tpu_custom_call.1} parent=1 // pred_check_branch
      %74 = sbr.rel (%p72) target = $region25
    $region24: #{tpu_custom_call.1} parent=1 // pred_region
      %v75 = vld [vmem:[#allocation3] sm:$0xff]
      %v76 = vld [vmem:[#allocation3 + $0x8] sm:$0xff]
      %v77 = vld [vmem:[#allocation3 + $0x10] sm:$0xff]
      %v78 = vld [vmem:[#allocation3 + $0x18] sm:$0xff]
      %v79 = vmul.f32 %v75, 0.5
      %v80 = vmul.f32 %v76, 0.5
      %v81 = vmul.f32 %v77, 0.5
      %v82 = vmul.f32 %v78, 0.5
      %v83 = vtanh.pop %v79
      %v84 = vtanh.pop %v80
      %v85 = vtanh.pop %v81
      %v86 = vtanh.pop %v82
      %v87 = vld [vmem:[#allocation6] sm:$0xff]
      %v88 = vld [vmem:[#allocation6 + $0x8] sm:$0xff]
      %v89 = vld [vmem:[#allocation6 + $0x10] sm:$0xff]
      %v90 = vld [vmem:[#allocation6 + $0x18] sm:$0xff]
      %v91 = vld [vmem:[#allocation2] sm:$0xff]
      %v92 = vmul.f32 %v87, %v83
      %v93 = vmul.f32 %v88, %v84
      %v94 = vmul.f32 %v89, %v85
      %v95 = vmul.f32 %v90, %v86
      %v96 = vadd.f32 %v92, %v93
      %v97 = vadd.f32 %v96, %v94
      %v98 = vadd.f32 %v97, %v95
      %v99 = vadd.f32 %v91, %v98
      %100 = vst [vmem:[#allocation2] sm:$0xff] %v99
      %s101 = scalar_lea.vmem [#allocation2], 8
      %v102 = vld [vmem:[%s101] sm:$0xff]
      %v103 = vadd.f32 %v83, %v84
      %v104 = vadd.f32 %v103, %v85
      %v105 = vadd.f32 %v104, %v86
      %v106 = vadd.f32 %v102, %v105
      %107 = vst [vmem:[%s101] sm:$0xff] %v106
      %s108 = scalar_lea.vmem [#allocation2], 16
      %v109 = vld [vmem:[%s108] sm:$0xff]
      %v110 = vadd.f32 %v87, %v88
      %v111 = vadd.f32 %v110, %v89
      %v112 = vadd.f32 %v111, %v90
      %v113 = vadd.f32 %v109, %v112
      %114 = vst [vmem:[%s108] sm:$0xff] %v113
    $region25: #{tpu_custom_call.1} parent=1 // pred_fallthru
      _
    %p115 = scmp.gt.s32.totalorder %s69, 2048
    %p116 = pnand %p71, %p115
    %p117 = pneg %p116
    // Predicated region
    $region26: #{tpu_custom_call.1} parent=1 // pred_check
      _
    $region27: #{tpu_custom_call.1} parent=1 // pred_check_branch
      %119 = sbr.rel (%p116) target = $region29
    $region28: #{tpu_custom_call.1} parent=1 // pred_region
      %v120 = vld [vmem:[#allocation3] sm:$0xff]
      %v121 = vld [vmem:[#allocation3 + $0x8] sm:$0xff]
      %v122 = vld [vmem:[#allocation3 + $0x10] sm:$0xff]
      %v123 = vld [vmem:[#allocation3 + $0x18] sm:$0xff]
      %v124 = vmul.f32 %v120, 0.5
      %v125 = vmul.f32 %v121, 0.5
      %v126 = vmul.f32 %v122, 0.5
      %v127 = vmul.f32 %v123, 0.5
      %v128 = vtanh.pop %v124
      %v129 = vtanh.pop %v125
      %v130 = vtanh.pop %v126
      %v131 = vtanh.pop %v127
      %v132 = vld [vmem:[#allocation6] sm:$0xff]
      %v133 = vld [vmem:[#allocation6 + $0x8] sm:$0xff]
      %v134 = vld [vmem:[#allocation6 + $0x10] sm:$0xff]
      %v135 = vld [vmem:[#allocation6 + $0x18] sm:$0xff]
      %v136 = vlaneseq
      %v137 = vshrl.u32 %v136, 7
      %v138 = vadd.s32 %v137, 8
      %v139 = vadd.s32 %v137, 16
      %v140 = vadd.s32 %v137, 24
      %v141 = vlaneseq
      %v142 = vand.u32 %v141, 127
      %v143 = vmul.u32 %v137, 128
      %v144 = vmul.u32 %v138, 128
      %v145 = vmul.u32 %v139, 128
      %v146 = vmul.u32 %v140, 128
      %v147 = vstv %s68
      %v148 = vadd.s32 %v147, %v143
      %v149 = vadd.s32 %v147, %v144
      %v150 = vadd.s32 %v147, %v145
      %v151 = vadd.s32 %v147, %v146
      %v152 = vadd.s32 %v148, %v142
      %v153 = vadd.s32 %v149, %v142
      %v154 = vadd.s32 %v150, %v142
      %v155 = vadd.s32 %v151, %v142
      %vm156 = vcmp.lt.s32.totalorder %v152, 2048
      %vm157 = vcmp.lt.s32.totalorder %v153, 2048
      %vm158 = vcmp.lt.s32.totalorder %v154, 2048
      %vm159 = vcmp.lt.s32.totalorder %v155, 2048
      %v160 = vsel %vm156, %v128, 0.0
      %v161 = vsel %vm157, %v129, 0.0
      %v162 = vsel %vm158, %v130, 0.0
      %v163 = vsel %vm159, %v131, 0.0
      %v164 = vsel %vm156, %v132, 0.0
      %v165 = vsel %vm157, %v133, 0.0
      %v166 = vsel %vm158, %v134, 0.0
      %v167 = vsel %vm159, %v135, 0.0
      %v168 = vld [vmem:[#allocation2] sm:$0xff]
      %v169 = vmul.f32 %v164, %v160
      %v170 = vmul.f32 %v165, %v161
      %v171 = vmul.f32 %v166, %v162
      %v172 = vmul.f32 %v167, %v163
      %v173 = vadd.f32 %v169, %v170
      %v174 = vadd.f32 %v173, %v171
      %v175 = vadd.f32 %v174, %v172
      %v176 = vadd.f32 %v168, %v175
      %177 = vst [vmem:[#allocation2] sm:$0xff] %v176
      %s178 = scalar_lea.vmem [#allocation2], 8
      %v179 = vld [vmem:[%s178] sm:$0xff]
      %v180 = vadd.f32 %v160, %v161
      %v181 = vadd.f32 %v180, %v162
      %v182 = vadd.f32 %v181, %v163
      %v183 = vadd.f32 %v179, %v182
      %184 = vst [vmem:[%s178] sm:$0xff] %v183
      %s185 = scalar_lea.vmem [#allocation2], 16
      %v186 = vld [vmem:[%s185] sm:$0xff]
      %v187 = vadd.f32 %v164, %v165
      %v188 = vadd.f32 %v187, %v166
      %v189 = vadd.f32 %v188, %v167
      %v190 = vadd.f32 %v186, %v189
      %191 = vst [vmem:[%s185] sm:$0xff] %v190
    $region29: #{tpu_custom_call.1} parent=1 // pred_fallthru
      _
    // Predicated region
    $region30: #{tpu_custom_call.1} parent=1 // pred_check
      %p192 = pneg %p60
    $region31: #{tpu_custom_call.1} parent=1 // pred_check_branch
      %194 = sbr.rel (%p192) target = $region33
    $region32: #{tpu_custom_call.1} parent=1 // pred_region
      %v195 = vld [vmem:[#allocation2] sm:$0xff]
      %196 = vadd.xlane.f32.xlu0 %v195
      %v197 = vpop.xlane.xlu0 %196
      %v198 = vrot.slane %v197, 4
      %v199 = vadd.f32 %v197, %v198
      %v200 = vrot.slane %v199, 2
      %v201 = vadd.f32 %v199, %v200
      %v202 = vrot.slane %v201, 1
      %v203 = vadd.f32 %v201, %v202
      %s204 = vtos %v203
      %s205 = scalar_lea.smem [#allocation8], 0
      %206 = sst [smem:[%s205]] %s204
      %s207 = scalar_lea.vmem [#allocation2], 8
      %v208 = vld [vmem:[%s207] sm:$0xff]
      %209 = vadd.xlane.f32.xlu0 %v208
      %v210 = vpop.xlane.xlu0 %209
      %v211 = vrot.slane %v210, 4
      %v212 = vadd.f32 %v210, %v211
      %v213 = vrot.slane %v212, 2
      %v214 = vadd.f32 %v212, %v213
      %v215 = vrot.slane %v214, 1
      %v216 = vadd.f32 %v214, %v215
      %s217 = vtos %v216
      %s218 = scalar_lea.smem [#allocation8], 1
      %219 = sst [smem:[%s218]] %s217
      %s220 = scalar_lea.vmem [#allocation2], 16
      %v221 = vld [vmem:[%s220] sm:$0xff]
      %222 = vadd.xlane.f32.xlu0 %v221
      %v223 = vpop.xlane.xlu0 %222
      %v224 = vrot.slane %v223, 4
      %v225 = vadd.f32 %v223, %v224
      %v226 = vrot.slane %v225, 2
      %v227 = vadd.f32 %v225, %v226
      %v228 = vrot.slane %v227, 1
      %v229 = vadd.f32 %v227, %v228
      %s230 = vtos %v229
      %s231 = scalar_lea.smem [#allocation8], 2
      %232 = sst [smem:[%s231]] %s230
    $region33: #{tpu_custom_call.1} parent=1 // pred_fallthru
      _
    // Predicated region
    $region34: #{tpu_custom_call.1} parent=1 // pred_check
      _
    $region35: #{tpu_custom_call.1} parent=1 // pred_check_branch
      %234 = sbr.rel (0) target = $region37
    $region36: #{tpu_custom_call.1} parent=1 // pred_region
      %s236 = ssub.s32 16, 16
      %237 = vsyncadd [#allocation5], %s236
      %240 = dma.smem_to_hbm [#allocation8], 16, %s2, [#allocation5]
    $region37: #{tpu_custom_call.1} parent=1 // pred_fallthru
      _
    // Predicated region
    $region38: #{tpu_custom_call.1} parent=1 // pred_check
      _
    $region39: #{tpu_custom_call.1} parent=1 // pred_check_branch
      %242 = sbr.rel (0) target = $region41
    $region40: #{tpu_custom_call.1} parent=1 // pred_region
      %243 = dma.done [#allocation5], 16
    $region41: #{tpu_custom_call.1} parent=1 // pred_fallthru
      _
    %244 = sfence
    %245 = vsyncpa [#allocation4], 1
    %246 = vsyncpa [#allocation7], 1
    %247 = vsyncpa [#allocation5], 1

</llo_original>
